<compile_context>
chip_gen: v7x
topology: tpu7x:2x2x1
jax: 0.10.0
libtpu: 0.0.40
codegen_flags: <defaults>
</compile_context>

<pallas_src>
import functools

import jax
import jax.numpy as jnp
from jax.experimental import pallas as pl
from jax.experimental.pallas import tpu as pltpu

_EPS = 1e-5
_VMEM_BUDGET = 12 * 1024 * 1024   # conservative: fits default scoped VMEM on v5e/v6e/v7x
_MAX_TILE_HW = 4096               # lane tile cap (multiple of 128)
_MAX_TILE_R = 1024                # row tile cap (multiple of 8)
_LANE = 128
_SUBLANE = 8


def _round_up(x, m):
    return ((x + m - 1) // m) * m


def _choose_tiles(R, HW, itemsize):
    """Pick (tile_r, tile_hw) so 2 in + 2 out double-buffered blocks fit the VMEM budget."""
    # Lane tile: take full rows when they fit (contiguous HBM DMA per block, single partial
    # store column at most); otherwise a large multiple of 128.
    if HW <= _MAX_TILE_HW:
        tile_hw = HW                      # equals full dim -> always layout-legal
    else:
        tile_hw = _MAX_TILE_HW            # multiple of 128
    vmem_cols = _round_up(tile_hw, _LANE)  # VMEM tiles are lane-padded

    # Row tile: fill the rest of the budget (x + out, each double-buffered -> 4 blocks).
    max_r = max(_VMEM_BUDGET // (4 * vmem_cols * itemsize), 1)
    if R <= max_r and R <= _MAX_TILE_R:
        tile_r = R                        # equals full dim -> layout-legal even if not %8
    else:
        tile_r = max((min(max_r, _MAX_TILE_R) // _SUBLANE) * _SUBLANE, _SUBLANE)
    return tile_r, tile_hw


def _fixed_bn_kernel(x_ref, scale_ref, shift_ref, o_ref):
    # x_ref / o_ref: (tile_r, tile_hw); scale_ref / shift_ref: (tile_r, 1) f32.
    x = x_ref[...].astype(jnp.float32)
    o_ref[...] = (x * scale_ref[...] + shift_ref[...]).astype(o_ref.dtype)


@functools.partial(jax.jit, static_argnames=("eps",))
def fixed_batch_norm_2d(x, weight, bias, running_mean, running_var, *, eps=_EPS):
    """x: (N, C, H, W). Params: (C,) each. Returns (N, C, H, W) in x.dtype."""
    N, C, H, W = x.shape
    HW = H * W
    R = N * C
    itemsize = jnp.dtype(x.dtype).itemsize
    tile_r, tile_hw = _choose_tiles(R, HW, itemsize)

    # Per-channel precompute (plain JAX, size C): one fused multiply-add per element in-kernel.
    inv_std = jax.lax.rsqrt(running_var.astype(jnp.float32) + eps)
    scale = weight.astype(jnp.float32) * inv_std
    shift = bias.astype(jnp.float32) - running_mean.astype(jnp.float32) * scale
    # Per-row (row = (n, c) pair) scale/shift columns: row r uses channel r % C.
    scale_rows = jnp.tile(scale, N).reshape(R, 1)
    shift_rows = jnp.tile(shift, N).reshape(R, 1)

    x2 = x.reshape(R, HW)                 # contiguous collapse -> free

    grid = (pl.cdiv(R, tile_r), pl.cdiv(HW, tile_hw))

    data_spec = pl.BlockSpec((tile_r, tile_hw), lambda r, h: (r, h))
    # Lane axis (h) is the innermost grid dim, so this block index is unchanged across it
    # and the tiny scale/shift tiles are not re-fetched while sweeping a row stripe.
    param_spec = pl.BlockSpec((tile_r, 1), lambda r, h: (r, 0))

    out = pl.pallas_call(
        _fixed_bn_kernel,
        out_shape=jax.ShapeDtypeStruct((R, HW), x.dtype),
        grid_spec=pltpu.PrefetchScalarGridSpec(
            num_scalar_prefetch=0,
            grid=grid,
            in_specs=[
                data_spec,    # x
                param_spec,   # scale
                param_spec,   # shift
            ],
            out_specs=data_spec,
        ),
        compiler_params=pltpu.CompilerParams(
            dimension_semantics=("parallel", "parallel"),
        ),
    )(x2, scale_rows, shift_rows)

    return out.reshape(N, C, H, W)


class FixedBatchNorm2d:
    """Mirror of the PyTorch module: fixed (buffer) stats and affine params."""

    def __init__(self, n):
        self.weight = jnp.ones((n,), jnp.float32)
        self.bias = jnp.zeros((n,), jnp.float32)
        self.running_mean = jnp.zeros((n,), jnp.float32)
        self.running_var = jnp.ones((n,), jnp.float32)

    def __call__(self, x):
        return fixed_batch_norm_2d(
            x, self.weight, self.bias, self.running_mean, self.running_var, eps=_EPS
        )


if __name__ == "__main__":
    key = jax.random.PRNGKey(0)
    N, C, H, W = 2, 4, 16, 16
    kx, km, kv, kw, kb = jax.random.split(key, 5)

    x = jax.random.normal(kx, (N, C, H, W), dtype=jnp.float32)

    mod = FixedBatchNorm2d(C)
    mod.running_mean = jax.random.normal(km, (C,), dtype=jnp.float32) * 0.5
    mod.running_var = jax.random.uniform(kv, (C,), dtype=jnp.float32, minval=0.5, maxval=2.0)
    mod.weight = jax.random.normal(kw, (C,), dtype=jnp.float32) + 1.0
    mod.bias = jax.random.normal(kb, (C,), dtype=jnp.float32) * 0.1

    y = mod(x)
    y = jax.block_until_ready(y)

    # Pure-JAX reference of eval-mode F.batch_norm semantics.
    ref = (
        (x - mod.running_mean[None, :, None, None])
        / jnp.sqrt(mod.running_var[None, :, None, None] + _EPS)
        * mod.weight[None, :, None, None]
        + mod.bias[None, :, None, None]
    )
    assert y.shape == (N, C, H, W) and y.dtype == x.dtype
    assert jnp.allclose(y, ref, atol=1e-5, rtol=1e-5)

    print("KERNEL_OK")
</pallas_src>

<mosaic_0001>
module attributes {stable_mosaic.version = 11 : i64} {
  func.func @_fixed_bn_kernel(%arg0: i32, %arg1: i32, %arg2: memref<8x256xf32, #tpu.memory_space<vmem>>, %arg3: memref<8x1xf32, #tpu.memory_space<vmem>>, %arg4: memref<8x1xf32, #tpu.memory_space<vmem>>, %arg5: memref<8x256xf32, #tpu.memory_space<vmem>>) attributes {dimension_semantics = [#tpu.dimension_semantics<parallel>, #tpu.dimension_semantics<parallel>], iteration_bounds = array<i64: 1, 1>, scalar_prefetch = 0 : i64, scratch_operands = 0 : i64, tpu.core_type = #tpu.core_type<tc>, window_params = [{transform_indices = @transform_0, window_bounds = array<i64: 8, 256>}, {transform_indices = @transform_1, window_bounds = array<i64: 8, 1>}, {transform_indices = @transform_2, window_bounds = array<i64: 8, 1>}, {transform_indices = @transform_3, window_bounds = array<i64: 8, 256>}]} {
    %c0 = arith.constant 0 : index
    %c0_0 = arith.constant 0 : index
    %0 = vector.load %arg2[%c0, %c0_0] : memref<8x256xf32, #tpu.memory_space<vmem>>, vector<8x256xf32>
    %c0_1 = arith.constant 0 : index
    %c0_2 = arith.constant 0 : index
    %1 = vector.load %arg3[%c0_1, %c0_2] : memref<8x1xf32, #tpu.memory_space<vmem>>, vector<8x1xf32>
    %2 = vector.broadcast %1 : vector<8x1xf32> to vector<8x256xf32>
    %3 = arith.mulf %0, %2 : vector<8x256xf32>
    %c0_3 = arith.constant 0 : index
    %c0_4 = arith.constant 0 : index
    %4 = vector.load %arg4[%c0_3, %c0_4] : memref<8x1xf32, #tpu.memory_space<vmem>>, vector<8x1xf32>
    %5 = vector.broadcast %4 : vector<8x1xf32> to vector<8x256xf32>
    %6 = arith.addf %3, %5 : vector<8x256xf32>
    %c0_5 = arith.constant 0 : index
    %c0_6 = arith.constant 0 : index
    %7 = vector.load %arg5[%c0_5, %c0_6] : memref<8x256xf32, #tpu.memory_space<vmem>>, vector<8x256xf32>
    tpu.vector_store %arg5[%c0_5, %c0_6], %6 {strides = array<i32>} : memref<8x256xf32, #tpu.memory_space<vmem>>, vector<8x256xf32>,
    return
  }
  func.func @transform_0(%arg0: i32, %arg1: i32) -> (i32, i32) {
    %c0_i32 = arith.constant 0 : i32
    return %arg0, %arg1 : i32, i32
  }
  func.func @transform_1(%arg0: i32, %arg1: i32) -> (i32, i32) {
    %c0_i32 = arith.constant 0 : i32
    %c0_i32_0 = arith.constant 0 : i32
    return %arg0, %c0_i32 : i32, i32
  }
  func.func @transform_2(%arg0: i32, %arg1: i32) -> (i32, i32) {
    %c0_i32 = arith.constant 0 : i32
    %c0_i32_0 = arith.constant 0 : i32
    return %arg0, %c0_i32 : i32, i32
  }
  func.func @transform_3(%arg0: i32, %arg1: i32) -> (i32, i32) {
    %c0_i32 = arith.constant 0 : i32
    return %arg0, %arg1 : i32, i32
  }
}

</mosaic_0001>

<llo_original>
// kernel: tile.18
$region0: #{tile.18}
  #allocation0 [shape = 's32[1]{0}', space=sflag, size = 0x4, scoped, tag = 'scoped memory for tile.18']
  %s0 = inlined_call_operand.vmem [shape: f32[4], index: 0, kind: input, shape index: {}]
  %s1 = inlined_call_operand.vmem [shape: f32[2,4], index: 1, kind: output, shape index: {}]
  // Predicated region
  $region2: #{tile.18} parent=0 // pred_check
    _
  $region3: #{tile.18} parent=0 // pred_check_branch
    %3 = sbr.rel (0) target = $region5
  $region4: #{tile.18} parent=0 // pred_region
    _
  $region5: #{tile.18} parent=0 // pred_fallthru
    _
  %v4 = vld [vmem:[%s0] ss:$0 sm:$0xff]
  %5 = vst [vmem:[%s1] sm:$0x3] %v4

// kernel: tile.0
$region0: #{tile.0}
  %s0 = inlined_call_operand.vmem [shape: f32[2,4], index: 0, kind: input, shape index: {}]
  %s1 = inlined_call_operand.vmem [shape: f32[8,1], index: 1, kind: output, shape index: {}]
  $region1: #{tile.0} parent=0
    #allocation0 [shape = 'u8[4096]{0}', space=vmem, size = 0x1000, scoped, tag = 'scoped mem for input reshape']
    %s3 = sshllo.u32 0, 2
    %v4 = vld [vmem:[%s0] sm:%s3]
    %5 = vst [vmem:[#allocation0] sm:%s3] %v4
    %v6 = vld [vmem:[#allocation0] sm:$0x3]
    %vm7 = vcmask 7168
    %8 = vst.msk [vmem:[%s1] ss:$4 sm:$0x3] %vm7, %v6
    %v9 = vld [vmem:[#allocation0] sm:$0x3]
    %10 = vrot.lane.b32.xlu0 %v9, 127
    %v11 = vpop.permute.xlu0 %10
    %vm12 = vcmask 7168
    %s13 = scalar_lea.vmem %s1, 1
    %14 = vst.msk [vmem:[%s13] ss:$4 sm:$0x3] %vm12, %v11
    %v15 = vld [vmem:[#allocation0] sm:$0x3]
    %16 = vrot.lane.b32.xlu0 %v15, 126
    %v17 = vpop.permute.xlu0 %16
    %vm18 = vcmask 7168
    %s19 = scalar_lea.vmem %s1, 2
    %20 = vst.msk [vmem:[%s19] ss:$4 sm:$0x3] %vm18, %v17
    %v21 = vld [vmem:[#allocation0] sm:$0x3]
    %22 = vrot.lane.b32.xlu0 %v21, 125
    %v23 = vpop.permute.xlu0 %22
    %vm24 = vcmask 7168
    %s25 = scalar_lea.vmem %s1, 3
    %26 = vst.msk [vmem:[%s25] ss:$4 sm:$0x3] %vm24, %v23

// kernel: fixed_batch_norm_2d.1
$region0: #{fixed_batch_norm_2d.1}
  #allocation0 [shape = 'u32[]', space=smem, size = 0x4, offset = 0x4, fixed_abs, tag = 'smem constant byte address 0x4 - core index']
  #allocation1 [shape = 'u32[144,128]{1,0:T(1,128)}', space=vmem, size = 0x12000, scoped, tag = 'internal scratch']
  %s0 = inlined_call_operand.vmem [shape: f32[8,256], index: 0, kind: input, shape index: {}]
  %s1 = inlined_call_operand.vmem [shape: f32[8,1], index: 1, kind: input, shape index: {}]
  %s2 = inlined_call_operand.vmem [shape: f32[8,1], index: 2, kind: input, shape index: {}]
  %s3 = inlined_call_operand.vmem [shape: f32[8,256], index: 3, kind: output, shape index: {}]
  %s4 = sld [smem:[#allocation0]]
  $region22: #{fixed_batch_norm_2d.1} parent=0
    _
  %s6 = ssub.s32 1, %s4
  %s7 = scalar_select 0, %s6, %s4
  // Predicated region
  $region2: #{fixed_batch_norm_2d.1} parent=0 // pred_check
    _
  $region3: #{fixed_batch_norm_2d.1} parent=0 // pred_check_branch
    %9 = sbr.rel (0) target = $region5
  $region4: #{fixed_batch_norm_2d.1} parent=0 // pred_region
    _
  $region5: #{fixed_batch_norm_2d.1} parent=0 // pred_fallthru
    _
  // Predicated region
  $region6: #{fixed_batch_norm_2d.1} parent=0 // pred_check
    _
  $region7: #{fixed_batch_norm_2d.1} parent=0 // pred_check_branch
    %11 = sbr.rel (0) target = $region9
  $region8: #{fixed_batch_norm_2d.1} parent=0 // pred_region
    _
  $region9: #{fixed_batch_norm_2d.1} parent=0 // pred_fallthru
    _
  // Predicated region
  $region10: #{fixed_batch_norm_2d.1} parent=0 // pred_check
    _
  $region11: #{fixed_batch_norm_2d.1} parent=0 // pred_check_branch
    %13 = sbr.rel (0) target = $region13
  $region12: #{fixed_batch_norm_2d.1} parent=0 // pred_region
    _
  $region13: #{fixed_batch_norm_2d.1} parent=0 // pred_fallthru
    _
  %v14 = vld [vmem:[%s0] sm:$0xff]
  %v15 = vld [vmem:[%s0 + $0x8] sm:$0xff]
  %v16 = vld [vmem:[%s1] sm:$0xff]
  %18 = vset.pattern.permute.xlu0 0
  %19 = vperm.xlu0 %18, %v16
  %v20 = vpop.permute.xlu0 %19
  %v22 = vmul.f32 %v14, %v20
  %v23 = vmul.f32 %v15, %v20
  %v24 = vld [vmem:[%s2] sm:$0xff]
  %26 = vset.pattern.permute.xlu0 0
  %27 = vperm.xlu0 %26, %v24
  %v28 = vpop.permute.xlu0 %27
  %v30 = vadd.f32 %v22, %v28
  %v31 = vadd.f32 %v23, %v28
  %32 = vst [vmem:[%s3] sm:$0xff] %v30
  %33 = vst [vmem:[%s3 + $0x8] sm:$0xff] %v31
  // Predicated region
  $region14: #{fixed_batch_norm_2d.1} parent=0 // pred_check
    _
  $region15: #{fixed_batch_norm_2d.1} parent=0 // pred_check_branch
    %35 = sbr.rel (0) target = $region17
  $region16: #{fixed_batch_norm_2d.1} parent=0 // pred_region
    _
  $region17: #{fixed_batch_norm_2d.1} parent=0 // pred_fallthru
    _
  // Predicated region
  $region18: #{fixed_batch_norm_2d.1} parent=0 // pred_check
    _
  $region19: #{fixed_batch_norm_2d.1} parent=0 // pred_check_branch
    %37 = sbr.rel (0) target = $region21
  $region20: #{fixed_batch_norm_2d.1} parent=0 // pred_region
    _
  $region21: #{fixed_batch_norm_2d.1} parent=0 // pred_fallthru
    _

</llo_original>
